<compile_context>
chip_gen: v5e
topology: v5e:2x2
jax: 0.10.0
libtpu: 0.0.40
codegen_flags: <defaults>
</compile_context>

<pallas_src>
import jax
import jax.numpy as jnp
from jax.experimental import pallas as pl
from jax.experimental.pallas import tpu as pltpu


def _round_up(n, m):
    return ((n + m - 1) // m) * m


def _generator_kernel(s_ref, z_ref, w1s_ref, w1z_ref, b1_ref, w2_ref, b2_ref, out_ref):
    # Fused concat: h = [S, Z] @ W1  ==  S @ W1s + Z @ W1z   (bf16 in, f32 acc)
    h = jnp.dot(s_ref[...], w1s_ref[...], preferred_element_type=jnp.float32)
    h = h + jnp.dot(z_ref[...], w1z_ref[...], preferred_element_type=jnp.float32)
    h = jnp.maximum(h + b1_ref[...], 0.0)                 # f32 bias + ReLU epilogue
    h = h.astype(w2_ref.dtype)                            # bf16 for second MXU pass
    y = jnp.dot(h, w2_ref[...], preferred_element_type=jnp.float32)
    y = jnp.maximum(y + b2_ref[...], 0.0)                 # f32 bias + ReLU epilogue
    out_ref[...] = y.astype(out_ref.dtype)


def generator_forward(S, Z, params, *, block_b=256):
    """Runs the Generator forward pass.

    S: (B, s_dim), Z: (B, z_dim)  -> (B, x_dim) float32
    params: dict with w1 (s_dim + z_dim, hidden), b1 (1, hidden),
                      w2 (hidden, x_dim),         b2 (1, x_dim)
    """
    assert block_b % 16 == 0, "batch tile must be a multiple of 16 (bf16 sublanes)"

    B, s_dim = S.shape
    Bz, z_dim = Z.shape
    assert B == Bz
    w1, b1, w2, b2 = params["w1"], params["b1"], params["w2"], params["b2"]
    hidden = w1.shape[1]
    x_dim = w2.shape[1]
    assert w1.shape[0] == s_dim + z_dim

    # --- split W1 to fuse the concat into the kernel --------------------------
    w1s = w1[:s_dim]
    w1z = w1[s_dim:]

    # --- pad feature dims to the 128-lane width (zero padding is exact) -------
    LANE = 128
    s_p = _round_up(s_dim, LANE)
    z_p = _round_up(z_dim, LANE)
    h_p = _round_up(hidden, LANE)
    x_p = _round_up(x_dim, LANE)

    Sp = jnp.pad(S, ((0, 0), (0, s_p - s_dim))).astype(jnp.bfloat16)
    Zp = jnp.pad(Z, ((0, 0), (0, z_p - z_dim))).astype(jnp.bfloat16)
    w1s_p = jnp.pad(w1s, ((0, s_p - s_dim), (0, h_p - hidden))).astype(jnp.bfloat16)
    w1z_p = jnp.pad(w1z, ((0, z_p - z_dim), (0, h_p - hidden))).astype(jnp.bfloat16)
    w2_p = jnp.pad(w2, ((0, h_p - hidden), (0, x_p - x_dim))).astype(jnp.bfloat16)
    b1_p = jnp.pad(b1, ((0, 0), (0, h_p - hidden))).astype(jnp.float32)
    b2_p = jnp.pad(b2, ((0, 0), (0, x_p - x_dim))).astype(jnp.float32)

    # --- batch tiling (handles ragged B by zero-padding the last tile) --------
    tb = min(block_b, _round_up(B, 16))
    B_p = _round_up(B, tb)
    if B_p != B:
        Sp = jnp.pad(Sp, ((0, B_p - B), (0, 0)))
        Zp = jnp.pad(Zp, ((0, B_p - B), (0, 0)))
    grid = (B_p // tb,)

    # --- advisory cost + explicit VMEM budget ----------------------------------
    flops = 2 * B_p * ((s_p + z_p) * h_p + h_p * x_p)
    bytes_accessed = (
        2 * (Sp.size + Zp.size + w1s_p.size + w1z_p.size + w2_p.size)  # bf16 inputs
        + 4 * (b1_p.size + b2_p.size)                                  # f32 biases
        + 4 * B_p * x_p                                                # f32 output
    )
    cost = pl.CostEstimate(flops=flops, transcendentals=0, bytes_accessed=bytes_accessed)

    dbl = 2  # pipeline double-buffering
    io_bytes = dbl * (tb * s_p * 2 + tb * z_p * 2 + tb * x_p * 4)
    w_bytes = dbl * ((s_p * h_p + z_p * h_p + h_p * x_p) * 2 + (h_p + x_p) * 4)
    scratch_bytes = tb * h_p * 4 + tb * x_p * 4
    vmem_limit = min(
        max(int(1.25 * (io_bytes + w_bytes + scratch_bytes)) + (4 << 20), 32 << 20),
        64 << 20,  # stay within v7x physical VMEM per TensorCore
    )

    # TODO(synk): on v7x, mark the constant weight BlockSpecs with
    # pipeline_mode=pl.Buffered(1) to single-buffer them and halve their VMEM
    # footprint (left at the default here for portability).
    out = pl.pallas_call(
        _generator_kernel,
        out_shape=jax.ShapeDtypeStruct((B_p, x_p), jnp.float32),
        grid_spec=pltpu.PrefetchScalarGridSpec(
            num_scalar_prefetch=0,
            grid=grid,
            in_specs=[
                pl.BlockSpec((tb, s_p), lambda i: (i, 0)),      # S tile over batch
                pl.BlockSpec((tb, z_p), lambda i: (i, 0)),      # Z tile over batch
                pl.BlockSpec((s_p, h_p), lambda i: (0, 0)),     # W1 (S rows), resident
                pl.BlockSpec((z_p, h_p), lambda i: (0, 0)),     # W1 (Z rows), resident
                pl.BlockSpec((1, h_p), lambda i: (0, 0)),       # b1
                pl.BlockSpec((h_p, x_p), lambda i: (0, 0)),     # W2, resident
                pl.BlockSpec((1, x_p), lambda i: (0, 0)),       # b2
            ],
            out_specs=pl.BlockSpec((tb, x_p), lambda i: (i, 0)),
        ),
        compiler_params=pltpu.CompilerParams(
            dimension_semantics=("parallel",),
            vmem_limit_bytes=vmem_limit,
        ),
        cost_estimate=cost,
    )(Sp, Zp, w1s_p, w1z_p, b1_p, w2_p, b2_p)

    return out[:B, :x_dim]


def init_generator_params(key, s_dim, z_dim, hidden, x_dim):
    """Deterministic synthetic init (Linear weights stored transposed: (in, out))."""
    total_dim = s_dim + z_dim
    k1, k2, k3, k4 = jax.random.split(key, 4)
    w1 = jax.random.normal(k1, (total_dim, hidden), jnp.float32) * 0.05
    b1 = jax.random.normal(k2, (1, hidden), jnp.float32) * 0.05
    w2 = jax.random.normal(k3, (hidden, x_dim), jnp.float32) * 0.05
    b2 = jax.random.normal(k4, (1, x_dim), jnp.float32) * 0.05
    return {"w1": w1, "b1": b1, "w2": w2, "b2": b2}


def generator_forward_ref(S, Z, params):
    """Pure-JAX reference (same bf16-operand / f32-accumulate numerics)."""
    ZS = jnp.concatenate([S, Z], axis=1)
    h = jnp.dot(ZS.astype(jnp.bfloat16), params["w1"].astype(jnp.bfloat16),
                preferred_element_type=jnp.float32)
    h = jnp.maximum(h + params["b1"], 0.0)
    y = jnp.dot(h.astype(jnp.bfloat16), params["w2"].astype(jnp.bfloat16),
                preferred_element_type=jnp.float32)
    return jnp.maximum(y + params["b2"], 0.0)


if __name__ == "__main__":
    # Small shapes consistent with the module (scaled-down defaults), chosen to
    # be NON-multiples of 128 / the batch tile so padding + tiling is exercised.
    B, s_dim, z_dim, hidden, x_dim = 40, 40, 24, 72, 160

    key = jax.random.PRNGKey(0)
    kS, kZ, kP = jax.random.split(key, 3)
    S = jax.random.normal(kS, (B, s_dim), jnp.float32)
    Z = jax.random.normal(kZ, (B, z_dim), jnp.float32)
    params = init_generator_params(kP, s_dim, z_dim, hidden, x_dim)

    out = generator_forward(S, Z, params, block_b=16)  # grid=(3,) -> real pipelining path
    out = jax.block_until_ready(out)

    ref = generator_forward_ref(S, Z, params)
    assert out.shape == (B, x_dim)
    max_err = float(jnp.max(jnp.abs(out - ref)))
    assert jnp.allclose(out, ref, atol=1e-3, rtol=1e-3), f"max abs err = {max_err}"

    print("KERNEL_OK")
</pallas_src>

<mosaic_0001>
module attributes {stable_mosaic.version = 11 : i64} {
  func.func @_generator_kernel(%arg0: i32, %arg1: memref<16x128xbf16, #tpu.memory_space<vmem>>, %arg2: memref<16x128xbf16, #tpu.memory_space<vmem>>, %arg3: memref<128x128xbf16, #tpu.memory_space<vmem>>, %arg4: memref<128x128xbf16, #tpu.memory_space<vmem>>, %arg5: memref<1x128xf32, #tpu.memory_space<vmem>>, %arg6: memref<128x256xbf16, #tpu.memory_space<vmem>>, %arg7: memref<1x256xf32, #tpu.memory_space<vmem>>, %arg8: memref<16x256xf32, #tpu.memory_space<vmem>>) attributes {dimension_semantics = [#tpu.dimension_semantics<parallel>], iteration_bounds = array<i64: 3>, scalar_prefetch = 0 : i64, scratch_operands = 0 : i64, tpu.core_type = #tpu.core_type<tc>, window_params = [{transform_indices = @transform_0, window_bounds = array<i64: 16, 128>}, {transform_indices = @transform_1, window_bounds = array<i64: 16, 128>}, {pipeline_mode = #tpu.pipeline_mode<synchronous>, transform_indices = @transform_2, window_bounds = array<i64: 128, 128>}, {pipeline_mode = #tpu.pipeline_mode<synchronous>, transform_indices = @transform_3, window_bounds = array<i64: 128, 128>}, {pipeline_mode = #tpu.pipeline_mode<synchronous>, transform_indices = @transform_4, window_bounds = array<i64: 1, 128>}, {pipeline_mode = #tpu.pipeline_mode<synchronous>, transform_indices = @transform_5, window_bounds = array<i64: 128, 256>}, {pipeline_mode = #tpu.pipeline_mode<synchronous>, transform_indices = @transform_6, window_bounds = array<i64: 1, 256>}, {transform_indices = @transform_7, window_bounds = array<i64: 16, 256>}]} {
    %c0 = arith.constant 0 : index
    %c0_0 = arith.constant 0 : index
    %0 = vector.load %arg1[%c0, %c0_0] : memref<16x128xbf16, #tpu.memory_space<vmem>>, vector<16x128xbf16>
    %c0_1 = arith.constant 0 : index
    %c0_2 = arith.constant 0 : index
    %1 = vector.load %arg3[%c0_1, %c0_2] : memref<128x128xbf16, #tpu.memory_space<vmem>>, vector<128x128xbf16>
    %cst = arith.constant dense<0.000000e+00> : vector<16x128xf32>
    %2 = tpu.matmul %0, %1, %cst {dimension_numbers = #tpu.dot_dimension_numbers<[1], [0], [0], [1], [0, 0, 1, 1], [], []>} : vector<16x128xbf16>, vector<128x128xbf16>, vector<16x128xf32> -> vector<16x128xf32>
    %c0_3 = arith.constant 0 : index
    %c0_4 = arith.constant 0 : index
    %3 = vector.load %arg2[%c0_3, %c0_4] : memref<16x128xbf16, #tpu.memory_space<vmem>>, vector<16x128xbf16>
    %c0_5 = arith.constant 0 : index
    %c0_6 = arith.constant 0 : index
    %4 = vector.load %arg4[%c0_5, %c0_6] : memref<128x128xbf16, #tpu.memory_space<vmem>>, vector<128x128xbf16>
    %cst_7 = arith.constant dense<0.000000e+00> : vector<16x128xf32>
    %5 = tpu.matmul %3, %4, %cst_7 {dimension_numbers = #tpu.dot_dimension_numbers<[1], [0], [0], [1], [0, 0, 1, 1], [], []>} : vector<16x128xbf16>, vector<128x128xbf16>, vector<16x128xf32> -> vector<16x128xf32>
    %6 = arith.addf %2, %5 : vector<16x128xf32>
    %c0_8 = arith.constant 0 : index
    %c0_9 = arith.constant 0 : index
    %7 = vector.load %arg5[%c0_8, %c0_9] : memref<1x128xf32, #tpu.memory_space<vmem>>, vector<1x128xf32>
    %8 = vector.broadcast %7 : vector<1x128xf32> to vector<16x128xf32>
    %9 = arith.addf %6, %8 : vector<16x128xf32>
    %cst_10 = arith.constant 0.000000e+00 : f32
    %10 = vector.broadcast %cst_10 : f32 to vector<16x128xf32>
    %11 = arith.maximumf %9, %10 : vector<16x128xf32>
    %12 = arith.truncf %11 : vector<16x128xf32> to vector<16x128xbf16>
    %c0_11 = arith.constant 0 : index
    %c0_12 = arith.constant 0 : index
    %13 = vector.load %arg6[%c0_11, %c0_12] : memref<128x256xbf16, #tpu.memory_space<vmem>>, vector<128x256xbf16>
    %cst_13 = arith.constant dense<0.000000e+00> : vector<16x256xf32>
    %14 = tpu.matmul %12, %13, %cst_13 {dimension_numbers = #tpu.dot_dimension_numbers<[1], [0], [0], [1], [0, 0, 1, 1], [], []>} : vector<16x128xbf16>, vector<128x256xbf16>, vector<16x256xf32> -> vector<16x256xf32>
    %c0_14 = arith.constant 0 : index
    %c0_15 = arith.constant 0 : index
    %15 = vector.load %arg7[%c0_14, %c0_15] : memref<1x256xf32, #tpu.memory_space<vmem>>, vector<1x256xf32>
    %16 = vector.broadcast %15 : vector<1x256xf32> to vector<16x256xf32>
    %17 = arith.addf %14, %16 : vector<16x256xf32>
    %cst_16 = arith.constant 0.000000e+00 : f32
    %18 = vector.broadcast %cst_16 : f32 to vector<16x256xf32>
    %19 = arith.maximumf %17, %18 : vector<16x256xf32>
    %c0_17 = arith.constant 0 : index
    %c0_18 = arith.constant 0 : index
    %20 = vector.load %arg8[%c0_17, %c0_18] : memref<16x256xf32, #tpu.memory_space<vmem>>, vector<16x256xf32>
    tpu.vector_store %arg8[%c0_17, %c0_18], %19 {strides = array<i32>} : memref<16x256xf32, #tpu.memory_space<vmem>>, vector<16x256xf32>,
    return
  }
  func.func @transform_0(%arg0: i32) -> (i32, i32) {
    %c0_i32 = arith.constant 0 : i32
    %c0_i32_0 = arith.constant 0 : i32
    return %arg0, %c0_i32 : i32, i32
  }
  func.func @transform_1(%arg0: i32) -> (i32, i32) {
    %c0_i32 = arith.constant 0 : i32
    %c0_i32_0 = arith.constant 0 : i32
    return %arg0, %c0_i32 : i32, i32
  }
  func.func @transform_2(%arg0: i32) -> (i32, i32) {
    %c0_i32 = arith.constant 0 : i32
    %c0_i32_0 = arith.constant 0 : i32
    %c0_i32_1 = arith.constant 0 : i32
    return %c0_i32, %c0_i32_0 : i32, i32
  }
  func.func @transform_3(%arg0: i32) -> (i32, i32) {
    %c0_i32 = arith.constant 0 : i32
    %c0_i32_0 = arith.constant 0 : i32
    %c0_i32_1 = arith.constant 0 : i32
    return %c0_i32, %c0_i32_0 : i32, i32
  }
  func.func @transform_4(%arg0: i32) -> (i32, i32) {
    %c0_i32 = arith.constant 0 : i32
    %c0_i32_0 = arith.constant 0 : i32
    %c0_i32_1 = arith.constant 0 : i32
    return %c0_i32, %c0_i32_0 : i32, i32
  }
  func.func @transform_5(%arg0: i32) -> (i32, i32) {
    %c0_i32 = arith.constant 0 : i32
    %c0_i32_0 = arith.constant 0 : i32
    %c0_i32_1 = arith.constant 0 : i32
    return %c0_i32, %c0_i32_0 : i32, i32
  }
  func.func @transform_6(%arg0: i32) -> (i32, i32) {
    %c0_i32 = arith.constant 0 : i32
    %c0_i32_0 = arith.constant 0 : i32
    %c0_i32_1 = arith.constant 0 : i32
    return %c0_i32, %c0_i32_0 : i32, i32
  }
  func.func @transform_7(%arg0: i32) -> (i32, i32) {
    %c0_i32 = arith.constant 0 : i32
    %c0_i32_0 = arith.constant 0 : i32
    return %arg0, %c0_i32 : i32, i32
  }
}

</mosaic_0001>

<llo_original>
// kernel: tpu_custom_call.1
$region0: #{tpu_custom_call.1}
  #allocation0 [shape = 'u32[]', space=smem, size = 0x4, offset = 0x4, fixed_abs, tag = 'smem constant byte address 0x4 - core index']
  #allocation1 [shape = 'u32[72,128]{1,0:T(1,128)}', space=vmem, size = 0x9000, scoped, tag = 'internal scratch']
  %s0 = inlined_call_operand.hbm [shape: bf16[48,128], index: 0, kind: input, shape index: {}]
  %s1 = inlined_call_operand.hbm [shape: bf16[48,128], index: 1, kind: input, shape index: {}]
  %s2 = inlined_call_operand.hbm [shape: bf16[128,128], index: 2, kind: input, shape index: {}]
  %s3 = inlined_call_operand.hbm [shape: bf16[128,128], index: 3, kind: input, shape index: {}]
  %s4 = inlined_call_operand.vmem [shape: f32[1,128], index: 4, kind: input, shape index: {}]
  %s5 = inlined_call_operand.hbm [shape: bf16[128,256], index: 5, kind: input, shape index: {}]
  %s6 = inlined_call_operand.vmem [shape: f32[1,256], index: 6, kind: input, shape index: {}]
  %s7 = inlined_call_operand.hbm [shape: f32[48,256], index: 7, kind: output, shape index: {}]
  %s8 = sld [smem:[#allocation0]]
  $region81: #{tpu_custom_call.1} parent=0
    _
  %s10 = ssub.s32 1, %s8
  %s11 = scalar_select 0, %s10, %s8
  $region1: #{tpu_custom_call.1} parent=0
    #allocation2 [shape = 'u8[8192]{0}', space=vmem, size = 0x2000, scoped, tag = 'input window, operand 0']
    #allocation3 [shape = 's32[2]{0}', space=sflag, size = 0x8, scoped, tag = 'scoped memory for tpu_custom_call.1']
    #allocation4 [shape = 's32[2]{0}', space=sflag, size = 0x8, scoped, tag = 'scoped memory for tpu_custom_call.1']
    #allocation5 [shape = 'u8[8192]{0}', space=vmem, size = 0x2000, scoped, tag = 'input window, operand 1']
    #allocation6 [shape = 's32[2]{0}', space=sflag, size = 0x8, scoped, tag = 'scoped memory for tpu_custom_call.1']
    #allocation7 [shape = 'u8[32768]{0}', space=vmem, size = 0x8000, scoped, tag = 'input window, operand 2, single buffered']
    #allocation8 [shape = 'u8[32768]{0}', space=vmem, size = 0x8000, scoped, tag = 'input window, operand 3, single buffered']
    #allocation9 [shape = 's32[1]{0}', space=sflag, size = 0x4, scoped, tag = 'scoped memory for tpu_custom_call.1']
    #allocation10 [shape = 'u8[65536]{0}', space=vmem, size = 0x10000, scoped, tag = 'input window, operand 5, single buffered']
    #allocation11 [shape = 'u8[32768]{0}', space=vmem, size = 0x8000, scoped, tag = 'output window, operand 0']
    %12 = vsyncpa [#allocation3], 0
    %s13 = scalar_lea.sflag [#allocation3], 1
    %14 = vsyncpa %s13, 0
    %15 = vsyncpa [#allocation6], 0
    %s16 = scalar_lea.sflag [#allocation6], 1
    %17 = vsyncpa %s16, 0
    %18 = vsyncpa [#allocation9], 0
    %19 = vsyncpa [#allocation4], 0
    %s20 = scalar_lea.sflag [#allocation4], 1
    %21 = vsyncpa %s20, 0
    loop: start=0, step=1, limit=5
    $region2: #{tpu_custom_call.1} parent=1 // loop_pre_header
      _
    $region3: #{tpu_custom_call.1} parent=1 // loop_header
      %s23 = sphi 0, %s27
      %p24 = scmp.ge.s32.totalorder %s23, 5
      %s33 = sphi 0, %s35
      %s36 = sphi 0, %s33
      %s37 = sphi 0, %s36
      %s53 = sphi 0, %s37
      %s59 = sphi 0, %s61
      %s62 = sphi 0, %s59
      %s63 = sphi 0, %s62
      %s79 = sphi 0, %s63
      %s83 = sphi 0, %s83
      %s85 = sphi 0, %s83
      %s86 = sphi 0, %s85
      %s100 = sphi 0, %s86
      %s104 = sphi 0, %s104
      %s106 = sphi 0, %s104
      %s107 = sphi 0, %s106
      %s121 = sphi 0, %s107
      %s125 = sphi 0, %s125
      %s127 = sphi 0, %s125
      %s128 = sphi 0, %s127
      %s142 = sphi 0, %s128
      %s146 = sphi 0, %s146
      %s148 = sphi 0, %s146
      %s149 = sphi 0, %s148
      %s163 = sphi 0, %s149
      %s167 = sphi 0, %s167
      %s169 = sphi 0, %s167
      %s170 = sphi 0, %s169
      %s184 = sphi 0, %s170
      %s190 = sphi 0, %s192
      %s193 = sphi 0, %s190
      %s194 = sphi 0, %s193
      %s210 = sphi 0, %s194
    $region4: #{tpu_custom_call.1} parent=1 // loop_header_branch
      %26 = sbr.rel (%p24) target = $region8
    $region5: #{tpu_custom_call.1} parent=1 // loop_body
      %s28 = ssub.s32 %s23, 1
      %s29 = ssub.s32 %s23, 2
      %s30 = sadd.s32 %s23, 1
      %s31 = ssub.s32 %s23, %s30
      %p32 = scmp.eq.s32.totalorder %s31, 0
      %s34 = sadd.s32 %s33, 1
      %s35 = scalar_select %p32, %s33, %s34
      %p38 = pneg %p32
      %p39 = scmp.eq.s32.totalorder %s23, 2
      %p40 = por %p38, %p39
      %p41 = scmp.ne.s32.totalorder %s33, %s36
      %p42 = scmp.eq.s32.totalorder %s23, 0
      %p43 = por %p41, %p42
      %p44 = scmp.ne.s32.totalorder %s33, %s36
      %p45 = scmp.eq.s32.totalorder %s28, 2
      %p46 = por %p44, %p45
      %p47 = scmp.ne.s32.totalorder %s36, %s37
      %p48 = scmp.eq.s32.totalorder %s28, 0
      %p49 = por %p47, %p48
      %p50 = scmp.ne.s32.totalorder %s36, %s37
      %p51 = scmp.eq.s32.totalorder %s29, 2
      %p52 = por %p50, %p51
      %p54 = scmp.ne.s32.totalorder %s37, %s53
      %p55 = scmp.eq.s32.totalorder %s29, 0
      %p56 = por %p54, %p55
      %s57 = ssub.s32 %s23, %s30
      %p58 = scmp.eq.s32.totalorder %s57, 0
      %s60 = sadd.s32 %s59, 1
      %s61 = scalar_select %p58, %s59, %s60
      %p64 = pneg %p58
      %p65 = scmp.eq.s32.totalorder %s23, 2
      %p66 = por %p64, %p65
      %p67 = scmp.ne.s32.totalorder %s59, %s62
      %p68 = scmp.eq.s32.totalorder %s23, 0
      %p69 = por %p67, %p68
      %p70 = scmp.ne.s32.totalorder %s59, %s62
      %p71 = scmp.eq.s32.totalorder %s28, 2
      %p72 = por %p70, %p71
      %p73 = scmp.ne.s32.totalorder %s62, %s63
      %p74 = scmp.eq.s32.totalorder %s28, 0
      %p75 = por %p73, %p74
      %p76 = scmp.ne.s32.totalorder %s62, %s63
      %p77 = scmp.eq.s32.totalorder %s29, 2
      %p78 = por %p76, %p77
      %p80 = scmp.ne.s32.totalorder %s63, %s79
      %p81 = scmp.eq.s32.totalorder %s29, 0
      %p82 = por %p80, %p81
      %s84 = sadd.s32 %s83, 1
      %p87 = scmp.eq.s32.totalorder %s23, 2
      %p88 = scmp.ne.s32.totalorder %s83, %s85
      %p89 = scmp.eq.s32.totalorder %s23, 0
      %p90 = por %p88, %p89
      %p91 = scmp.ne.s32.totalorder %s83, %s85
      %p92 = scmp.eq.s32.totalorder %s28, 2
      %p93 = por %p91, %p92
      %p94 = scmp.ne.s32.totalorder %s85, %s86
      %p95 = scmp.eq.s32.totalorder %s28, 0
      %p96 = por %p94, %p95
      %p97 = scmp.ne.s32.totalorder %s85, %s86
      %p98 = scmp.eq.s32.totalorder %s29, 2
      %p99 = por %p97, %p98
      %p101 = scmp.ne.s32.totalorder %s86, %s100
      %p102 = scmp.eq.s32.totalorder %s29, 0
      %p103 = por %p101, %p102
      %s105 = sadd.s32 %s104, 1
      %p108 = scmp.eq.s32.totalorder %s23, 2
      %p109 = scmp.ne.s32.totalorder %s104, %s106
      %p110 = scmp.eq.s32.totalorder %s23, 0
      %p111 = por %p109, %p110
      %p112 = scmp.ne.s32.totalorder %s104, %s106
      %p113 = scmp.eq.s32.totalorder %s28, 2
      %p114 = por %p112, %p113
      %p115 = scmp.ne.s32.totalorder %s106, %s107
      %p116 = scmp.eq.s32.totalorder %s28, 0
      %p117 = por %p115, %p116
      %p118 = scmp.ne.s32.totalorder %s106, %s107
      %p119 = scmp.eq.s32.totalorder %s29, 2
      %p120 = por %p118, %p119
      %p122 = scmp.ne.s32.totalorder %s107, %s121
      %p123 = scmp.eq.s32.totalorder %s29, 0
      %p124 = por %p122, %p123
      %s126 = sadd.s32 %s125, 1
      %p129 = scmp.eq.s32.totalorder %s23, 2
      %p130 = scmp.ne.s32.totalorder %s125, %s127
      %p131 = scmp.eq.s32.totalorder %s23, 0
      %p132 = por %p130, %p131
      %p133 = scmp.ne.s32.totalorder %s125, %s127
      %p134 = scmp.eq.s32.totalorder %s28, 2
      %p135 = por %p133, %p134
      %p136 = scmp.ne.s32.totalorder %s127, %s128
      %p137 = scmp.eq.s32.totalorder %s28, 0
      %p138 = por %p136, %p137
      %p139 = scmp.ne.s32.totalorder %s127, %s128
      %p140 = scmp.eq.s32.totalorder %s29, 2
      %p141 = por %p139, %p140
      %p143 = scmp.ne.s32.totalorder %s128, %s142
      %p144 = scmp.eq.s32.totalorder %s29, 0
      %p145 = por %p143, %p144
      %s147 = sadd.s32 %s146, 1
      %p150 = scmp.eq.s32.totalorder %s23, 2
      %p151 = scmp.ne.s32.totalorder %s146, %s148
      %p152 = scmp.eq.s32.totalorder %s23, 0
      %p153 = por %p151, %p152
      %p154 = scmp.ne.s32.totalorder %s146, %s148
      %p155 = scmp.eq.s32.totalorder %s28, 2
      %p156 = por %p154, %p155
      %p157 = scmp.ne.s32.totalorder %s148, %s149
      %p158 = scmp.eq.s32.totalorder %s28, 0
      %p159 = por %p157, %p158
      %p160 = scmp.ne.s32.totalorder %s148, %s149
      %p161 = scmp.eq.s32.totalorder %s29, 2
      %p162 = por %p160, %p161
      %p164 = scmp.ne.s32.totalorder %s149, %s163
      %p165 = scmp.eq.s32.totalorder %s29, 0
      %p166 = por %p164, %p165
      %s168 = sadd.s32 %s167, 1
      %p171 = scmp.eq.s32.totalorder %s23, 2
      %p172 = scmp.ne.s32.totalorder %s167, %s169
      %p173 = scmp.eq.s32.totalorder %s23, 0
      %p174 = por %p172, %p173
      %p175 = scmp.ne.s32.totalorder %s167, %s169
      %p176 = scmp.eq.s32.totalorder %s28, 2
      %p177 = por %p175, %p176
      %p178 = scmp.ne.s32.totalorder %s169, %s170
      %p179 = scmp.eq.s32.totalorder %s28, 0
      %p180 = por %p178, %p179
      %p181 = scmp.ne.s32.totalorder %s169, %s170
      %p182 = scmp.eq.s32.totalorder %s29, 2
      %p183 = por %p181, %p182
      %p185 = scmp.ne.s32.totalorder %s170, %s184
      %p186 = scmp.eq.s32.totalorder %s29, 0
      %p187 = por %p185, %p186
      %s188 = ssub.s32 %s23, %s30
      %p189 = scmp.eq.s32.totalorder %s188, 0
      %s191 = sadd.s32 %s190, 1
      %s192 = scalar_select %p189, %s190, %s191
      %p195 = pneg %p189
      %p196 = scmp.eq.s32.totalorder %s23, 2
      %p197 = por %p195, %p196
      %p198 = scmp.ne.s32.totalorder %s190, %s193
      %p199 = scmp.eq.s32.totalorder %s23, 0
      %p200 = por %p198, %p199
      %p201 = scmp.ne.s32.totalorder %s190, %s193
      %p202 = scmp.eq.s32.totalorder %s28, 2
      %p203 = por %p201, %p202
      %p204 = scmp.ne.s32.totalorder %s193, %s194
      %p205 = scmp.eq.s32.totalorder %s28, 0
      %p206 = por %p204, %p205
      %p207 = scmp.ne.s32.totalorder %s193, %s194
      %p208 = scmp.eq.s32.totalorder %s29, 2
      %p209 = por %p207, %p208
      %p211 = scmp.ne.s32.totalorder %s194, %s210
      %p212 = scmp.eq.s32.totalorder %s29, 0
      %p213 = por %p211, %p212
      %p214 = scmp.le.s32.totalorder 1, %s23
      %p215 = scmp.lt.s32.totalorder %s23, 4
      %p216 = pnand %p214, %p215
      %p217 = pneg %p216
      // Predicated region
      $region9: #{tpu_custom_call.1} parent=5 // pred_check
        _
      $region10: #{tpu_custom_call.1} parent=5 // pred_check_branch
        %219 = sbr.rel (%p216) target = $region12
      $region11: #{tpu_custom_call.1} parent=5 // pred_region
        %s220 = ssub.s32 %s23, 1
        // Predicated region
        $region13: #{tpu_custom_call.1} parent=11 // pred_check
          %p221 = pneg %p96
        $region14: #{tpu_custom_call.1} parent=11 // pred_check_branch
          %223 = sbr.rel (%p221) target = $region16
        $region15: #{tpu_custom_call.1} parent=11 // pred_region
          %225 = vsyncadd [#allocation6], 0
          %s226 = sshll.u32 %s2, 4
          %s227 = int_to_ptr.hbm [resolvable:$true] %s226
          %s228 = sshll.u32 [#allocation7], 4
          %s229 = int_to_ptr.vmem [resolvable:$true] %s228
          %234 = dma.hbm_to_vmem [thread:$0]  %s227, 1024, %s229, [#allocation6], 64, 64, 4
        $region16: #{tpu_custom_call.1} parent=11 // pred_fallthru
          _
        // Predicated region
        $region17: #{tpu_custom_call.1} parent=11 // pred_check
          %p235 = pneg %p117
        $region18: #{tpu_custom_call.1} parent=11 // pred_check_branch
          %237 = sbr.rel (%p235) target = $region20
        $region19: #{tpu_custom_call.1} parent=11 // pred_region
          %239 = vsyncadd [#allocation9], 0
          %s240 = sshll.u32 %s3, 4
          %s241 = int_to_ptr.hbm [resolvable:$true] %s240
          %s242 = sshll.u32 [#allocation8], 4
          %s243 = int_to_ptr.vmem [resolvable:$true] %s242
          %248 = dma.hbm_to_vmem [thread:$0]  %s241, 1024, %s243, [#allocation9], 64, 64, 4
        $region20: #{tpu_custom_call.1} parent=11 // pred_fallthru
          _
        // Predicated region
        $region21: #{tpu_custom_call.1} parent=11 // pred_check
          %p249 = pneg %p138
        $region22: #{tpu_custom_call.1} parent=11 // pred_check_branch
          %251 = sbr.rel (%p249) target = $region24
        $region23: #{tpu_custom_call.1} parent=11 // pred_region
          _
        $region24: #{tpu_custom_call.1} parent=11 // pred_fallthru
          _
        // Predicated region
        $region25: #{tpu_custom_call.1} parent=11 // pred_check
          %p252 = pneg %p159
        $region26: #{tpu_custom_call.1} parent=11 // pred_check_branch
          %254 = sbr.rel (%p252) target = $region28
        $region27: #{tpu_custom_call.1} parent=11 // pred_region
          %256 = vsyncadd [#allocation9], 0
          %s257 = sshll.u32 %s5, 4
          %s258 = int_to_ptr.hbm [resolvable:$true] %s257
          %s259 = sshll.u32 [#allocation10], 4
          %s260 = int_to_ptr.vmem [resolvable:$true] %s259
          %265 = dma.hbm_to_vmem [thread:$0]  %s258, 2048, %s260, [#allocation9], 128, 128, 8
        $region28: #{tpu_custom_call.1} parent=11 // pred_fallthru
          _
        // Predicated region
        $region29: #{tpu_custom_call.1} parent=11 // pred_check
          %p266 = pneg %p180
        $region30: #{tpu_custom_call.1} parent=11 // pred_check_branch
          %268 = sbr.rel (%p266) target = $region32
        $region31: #{tpu_custom_call.1} parent=11 // pred_region
          _
        $region32: #{tpu_custom_call.1} parent=11 // pred_fallthru
          _
      $region12: #{tpu_custom_call.1} parent=5 // pred_fallthru
        _
      %p269 = scmp.lt.s32.totalorder %s23, 3
      // Predicated region
      $region33: #{tpu_custom_call.1} parent=5 // pred_check
        %p270 = pneg %p269
      $region34: #{tpu_custom_call.1} parent=5 // pred_check_branch
        %272 = sbr.rel (%p270) target = $region36
      $region35: #{tpu_custom_call.1} parent=5 // pred_region
        // Predicated region
        $region37: #{tpu_custom_call.1} parent=35 // pred_check
          %p273 = pneg %p43
        $region38: #{tpu_custom_call.1} parent=35 // pred_check_branch
          %275 = sbr.rel (%p273) target = $region40
        $region39: #{tpu_custom_call.1} parent=35 // pred_region
          %s276 = sand.u32 %s33, 1
          %s277 = scalar_lea.sflag [#allocation3], %s276
          %s278 = sand.u32 %s33, 1
          %s279 = smul.addr %s278, 8
          %s280 = scalar_lea.vmem [#allocation2], %s279
          %s281 = smul.u32 2, %s23
          %283 = vsyncadd %s277, 0
          %s284 = smul.addr %s281, 4
          %s285 = scalar_lea.hbm %s0, %s284
          %s286 = sshll.u32 %s285, 4
          %s287 = int_to_ptr.hbm [resolvable:$true] %s286
          %s288 = sshll.u32 %s280, 4
          %s289 = int_to_ptr.vmem [resolvable:$true] %s288
          %294 = dma.hbm_to_vmem [thread:$0]  %s287, 128, %s289, %s277, 64, 64, 4
        $region40: #{tpu_custom_call.1} parent=35 // pred_fallthru
          _
        // Predicated region
        $region41: #{tpu_custom_call.1} parent=35 // pred_check
          %p295 = pneg %p69
        $region42: #{tpu_custom_call.1} parent=35 // pred_check_branch
          %297 = sbr.rel (%p295) target = $region44
        $region43: #{tpu_custom_call.1} parent=35 // pred_region
          %s298 = sand.u32 %s23, 1
          %s299 = scalar_lea.sflag [#allocation6], %s298
          %s300 = sand.u32 %s59, 1
          %s301 = smul.addr %s300, 8
          %s302 = scalar_lea.vmem [#allocation5], %s301
          %s303 = smul.u32 2, %s23
          %305 = vsyncadd %s299, 0
          %s306 = smul.addr %s303, 4
          %s307 = scalar_lea.hbm %s1, %s306
          %s308 = sshll.u32 %s307, 4
          %s309 = int_to_ptr.hbm [resolvable:$true] %s308
          %s310 = sshll.u32 %s302, 4
          %s311 = int_to_ptr.vmem [resolvable:$true] %s310
          %316 = dma.hbm_to_vmem [thread:$0]  %s309, 128, %s311, %s299, 64, 64, 4
        $region44: #{tpu_custom_call.1} parent=35 // pred_fallthru
          _
      $region36: #{tpu_custom_call.1} parent=5 // pred_fallthru
        _
      %p317 = scmp.le.s32.totalorder 1, %s23
      %p318 = scmp.lt.s32.totalorder %s23, 4
      %p319 = pnand %p317, %p318
      %p320 = pneg %p319
      // Predicated region
      $region45: #{tpu_custom_call.1} parent=5 // pred_check
        _
      $region46: #{tpu_custom_call.1} parent=5 // pred_check_branch
        %322 = sbr.rel (%p319) target = $region48
      $region47: #{tpu_custom_call.1} parent=5 // pred_region
        %s323 = ssub.s32 %s23, 1
        %s324 = sand.u32 %s36, 1
        %s325 = scalar_lea.sflag [#allocation3], %s324
        %s326 = sand.u32 %s36, 1
        %s327 = smul.addr %s326, 8
        %s328 = scalar_lea.vmem [#allocation2], %s327
        // Predicated region
        $region49: #{tpu_custom_call.1} parent=47 // pred_check
          %p329 = pneg %p49
        $region50: #{tpu_custom_call.1} parent=47 // pred_check_branch
          %331 = sbr.rel (%p329) target = $region52
        $region51: #{tpu_custom_call.1} parent=47 // pred_region
          %333 = dma.done %s325, 128
        $region52: #{tpu_custom_call.1} parent=47 // pred_fallthru
          _
        %s334 = sand.u32 %s28, 1
        %s335 = scalar_lea.sflag [#allocation6], %s334
        %s336 = sand.u32 %s62, 1
        %s337 = smul.addr %s336, 8
        %s338 = scalar_lea.vmem [#allocation5], %s337
        // Predicated region
        $region53: #{tpu_custom_call.1} parent=47 // pred_check
          %p339 = pneg %p75
        $region54: #{tpu_custom_call.1} parent=47 // pred_check_branch
          %341 = sbr.rel (%p339) target = $region56
        $region55: #{tpu_custom_call.1} parent=47 // pred_region
          %343 = dma.done %s335, 128
        $region56: #{tpu_custom_call.1} parent=47 // pred_fallthru
          _
        // Predicated region
        $region57: #{tpu_custom_call.1} parent=47 // pred_check
          %p344 = pneg %p96
        $region58: #{tpu_custom_call.1} parent=47 // pred_check_branch
          %346 = sbr.rel (%p344) target = $region60
        $region59: #{tpu_custom_call.1} parent=47 // pred_region
          %348 = dma.done [#allocation6], 1024
        $region60: #{tpu_custom_call.1} parent=47 // pred_fallthru
          _
        // Predicated region
        $region61: #{tpu_custom_call.1} parent=47 // pred_check
          %p349 = pneg %p117
        $region62: #{tpu_custom_call.1} parent=47 // pred_check_branch
          %351 = sbr.rel (%p349) target = $region64
        $region63: #{tpu_custom_call.1} parent=47 // pred_region
          %353 = dma.done [#allocation9], 1024
        $region64: #{tpu_custom_call.1} parent=47 // pred_fallthru
          _
        // Predicated region
        $region65: #{tpu_custom_call.1} parent=47 // pred_check
          %p354 = pneg %p159
        $region66: #{tpu_custom_call.1} parent=47 // pred_check_branch
          %356 = sbr.rel (%p354) target = $region68
        $region67: #{tpu_custom_call.1} parent=47 // pred_region
          %358 = dma.done [#allocation9], 2048
        $region68: #{tpu_custom_call.1} parent=47 // pred_fallthru
          _
        %s359 = sand.u32 %s36, 1
        %s360 = scalar_lea.sflag [#allocation3], %s359
        %s361 = sand.u32 %s36, 1
        %s362 = smul.addr %s361, 8
        %s363 = scalar_lea.vmem [#allocation2], %s362
        %p364 = pneg %p49
        %p365 = pneg %p46
        %s366 = sand.u32 %s28, 1
        %s367 = scalar_lea.sflag [#allocation6], %s366
        %s368 = sand.u32 %s62, 1
        %s369 = smul.addr %s368, 8
        %s370 = scalar_lea.vmem [#allocation5], %s369
        %p371 = pneg %p75
        %p372 = pneg %p72
        %p373 = pneg %p96
        %p374 = pneg %p93
        %p375 = pneg %p117
        %p376 = pneg %p114
        %p377 = pneg %p138
        %p378 = pneg %p135
        %p379 = pneg %p159
        %p380 = pneg %p156
        %p381 = pneg %p180
        %p382 = pneg %p177
        %p383 = pneg %p206
        %p384 = pneg %p203
        %s385 = sand.u32 %s193, 1
        %s386 = scalar_lea.sflag [#allocation4], %s385
        %s387 = sand.u32 %s193, 1
        %s388 = smul.addr %s387, 32
        %s389 = scalar_lea.vmem [#allocation11], %s388
        %s390 = smul.u32 2, %s28
        %s391 = smul.u32 2, %s28
        %s392 = smul.u32 2, %s28
        %v393 = vld [vmem:[%s328] sm:$0xf]
        %v394 = vld [vmem:[%s328 + $0x4] sm:$0xf]
        %v395 = vld [vmem:[#allocation7] sm:$0xf]
        %v396 = vld [vmem:[#allocation7 + $0x4] sm:$0xf]
        %v397 = vld [vmem:[#allocation7 + $0x8] sm:$0xf]
        %v398 = vld [vmem:[#allocation7 + $0xc] sm:$0xf]
        %v399 = vld [vmem:[#allocation7 + $0x10] sm:$0xf]
        %v400 = vld [vmem:[#allocation7 + $0x14] sm:$0xf]
        %v401 = vld [vmem:[#allocation7 + $0x18] sm:$0xf]
        %v402 = vld [vmem:[#allocation7 + $0x1c] sm:$0xf]
        %v403 = vld [vmem:[#allocation7 + $0x20] sm:$0xf]
        %v404 = vld [vmem:[#allocation7 + $0x24] sm:$0xf]
        %v405 = vld [vmem:[#allocation7 + $0x28] sm:$0xf]
        %v406 = vld [vmem:[#allocation7 + $0x2c] sm:$0xf]
        %v407 = vld [vmem:[#allocation7 + $0x30] sm:$0xf]
        %v408 = vld [vmem:[#allocation7 + $0x34] sm:$0xf]
        %v409 = vld [vmem:[#allocation7 + $0x38] sm:$0xf]
        %v410 = vld [vmem:[#allocation7 + $0x3c] sm:$0xf]
        %v411 = vld [vmem:[%s338] sm:$0xf]
        %v412 = vld [vmem:[%s338 + $0x4] sm:$0xf]
        %v413 = vld [vmem:[#allocation8] sm:$0xf]
        %v414 = vld [vmem:[#allocation8 + $0x4] sm:$0xf]
        %v415 = vld [vmem:[#allocation8 + $0x8] sm:$0xf]
        %v416 = vld [vmem:[#allocation8 + $0xc] sm:$0xf]
        %v417 = vld [vmem:[#allocation8 + $0x10] sm:$0xf]
        %v418 = vld [vmem:[#allocation8 + $0x14] sm:$0xf]
        %v419 = vld [vmem:[#allocation8 + $0x18] sm:$0xf]
        %v420 = vld [vmem:[#allocation8 + $0x1c] sm:$0xf]
        %v421 = vld [vmem:[#allocation8 + $0x20] sm:$0xf]
        %v422 = vld [vmem:[#allocation8 + $0x24] sm:$0xf]
        %v423 = vld [vmem:[#allocation8 + $0x28] sm:$0xf]
        %v424 = vld [vmem:[#allocation8 + $0x2c] sm:$0xf]
        %v425 = vld [vmem:[#allocation8 + $0x30] sm:$0xf]
        %v426 = vld [vmem:[#allocation8 + $0x34] sm:$0xf]
        %v427 = vld [vmem:[#allocation8 + $0x38] sm:$0xf]
        %v428 = vld [vmem:[#allocation8 + $0x3c] sm:$0xf]
        %v431 = vunpack.c.l.b16 %v411
        %v432 = vunpack.c.l.b16 %v412
        %v433 = vpack.c.b16 %v432, %v431
        %v451 = vunpack.c.l.b16 %v413
        %v452 = vunpack.c.l.b16 %v414
        %v453 = vunpack.c.l.b16 %v415
        %v454 = vunpack.c.l.b16 %v416
        %v455 = vunpack.c.l.b16 %v417
        %v456 = vunpack.c.l.b16 %v418
        %v457 = vunpack.c.l.b16 %v419
        %v458 = vunpack.c.l.b16 %v420
        %v459 = vunpack.c.l.b16 %v421
        %v460 = vunpack.c.l.b16 %v422
        %v461 = vunpack.c.l.b16 %v423
        %v462 = vunpack.c.l.b16 %v424
        %v463 = vunpack.c.l.b16 %v425
        %v464 = vunpack.c.l.b16 %v426
        %v465 = vunpack.c.l.b16 %v427
        %v466 = vunpack.c.l.b16 %v428
        %v467 = vpack.c.b16 %v452, %v451
        %v468 = vpack.c.b16 %v454, %v453
        %v469 = vpack.c.b16 %v456, %v455
        %v470 = vpack.c.b16 %v458, %v457
        %v471 = vpack.c.b16 %v460, %v459
        %v472 = vpack.c.b16 %v462, %v461
        %v473 = vpack.c.b16 %v464, %v463
        %v474 = vpack.c.b16 %v466, %v465
        %483 = vmatpush.bf16.msra.mxu0 %v474
        %484 = vmatpush.bf16.msra.mxu0 %v473
        %485 = vmatpush.bf16.msra.mxu0 %v472
        %486 = vmatpush.bf16.msra.mxu0 %v471
        %487 = vmatpush.bf16.msra.mxu0 %v470
        %488 = vmatpush.bf16.msra.mxu0 %v469
        %489 = vmatpush.bf16.msra.mxu0 %v468
        %490 = vmatpush.bf16.msra.mxu0 %v467
        %491 = vmatmul.bf16.gmra.mxu0 %v433
        %v492 = vpop.f32.mrf.mxu0
        %v493 = vadd.f32 0.0, %v492
        %v494 = vpop.f32.mrf.mxu0
        %v495 = vadd.f32 0.0, %v494
        %496 = vdwg.mxu0
        %v499 = vunpack.c.l.b16 %v393
        %v500 = vunpack.c.l.b16 %v394
        %v501 = vpack.c.b16 %v500, %v499
        %v519 = vunpack.c.l.b16 %v395
        %v520 = vunpack.c.l.b16 %v396
        %v521 = vunpack.c.l.b16 %v397
        %v522 = vunpack.c.l.b16 %v398
        %v523 = vunpack.c.l.b16 %v399
        %v524 = vunpack.c.l.b16 %v400
        %v525 = vunpack.c.l.b16 %v401
        %v526 = vunpack.c.l.b16 %v402
        %v527 = vunpack.c.l.b16 %v403
        %v528 = vunpack.c.l.b16 %v404
        %v529 = vunpack.c.l.b16 %v405
        %v530 = vunpack.c.l.b16 %v406
        %v531 = vunpack.c.l.b16 %v407
        %v532 = vunpack.c.l.b16 %v408
        %v533 = vunpack.c.l.b16 %v409
        %v534 = vunpack.c.l.b16 %v410
        %v535 = vpack.c.b16 %v520, %v519
        %v536 = vpack.c.b16 %v522, %v521
        %v537 = vpack.c.b16 %v524, %v523
        %v538 = vpack.c.b16 %v526, %v525
        %v539 = vpack.c.b16 %v528, %v527
        %v540 = vpack.c.b16 %v530, %v529
        %v541 = vpack.c.b16 %v532, %v531
        %v542 = vpack.c.b16 %v534, %v533
        %551 = vmatpush.bf16.msra.mxu0 %v542
        %552 = vmatpush.bf16.msra.mxu0 %v541
        %553 = vmatpush.bf16.msra.mxu0 %v540
        %554 = vmatpush.bf16.msra.mxu0 %v539
        %555 = vmatpush.bf16.msra.mxu0 %v538
        %556 = vmatpush.bf16.msra.mxu0 %v537
        %557 = vmatpush.bf16.msra.mxu0 %v536
        %558 = vmatpush.bf16.msra.mxu0 %v535
        %559 = vmatmul.bf16.gmra.mxu0 %v501
        %v560 = vpop.f32.mrf.mxu0
        %v561 = vadd.f32 %v493, %v560
        %v562 = vpop.f32.mrf.mxu0
        %v563 = vadd.f32 %v495, %v562
        %564 = vdwg.mxu0
        %v565 = vld [vmem:[%s4] sm:$0x1]
        %v567 = vperm.slane %v565, 0
        %v569 = vadd.f32 %v561, %v567
        %v570 = vadd.f32 %v563, %v567
        %v571 = vmax.f32 %v569, 0.0
        %v572 = vmax.f32 %v570, 0.0
        %v573 = vpack.c.bf16 %v572, %v571
        %v574 = vld [vmem:[#allocation10] sm:$0xff]
        %v575 = vld [vmem:[#allocation10 + $0x8] sm:$0xff]
        %v576 = vld [vmem:[#allocation10 + $0x10] sm:$0xff]
        %v577 = vld [vmem:[#allocation10 + $0x18] sm:$0xff]
        %v578 = vld [vmem:[#allocation10 + $0x20] sm:$0xff]
        %v579 = vld [vmem:[#allocation10 + $0x28] sm:$0xff]
        %v580 = vld [vmem:[#allocation10 + $0x30] sm:$0xff]
        %v581 = vld [vmem:[#allocation10 + $0x38] sm:$0xff]
        %v582 = vld [vmem:[#allocation10 + $0x40] sm:$0xff]
        %v583 = vld [vmem:[#allocation10 + $0x48] sm:$0xff]
        %v584 = vld [vmem:[#allocation10 + $0x50] sm:$0xff]
        %v585 = vld [vmem:[#allocation10 + $0x58] sm:$0xff]
        %v586 = vld [vmem:[#allocation10 + $0x60] sm:$0xff]
        %v587 = vld [vmem:[#allocation10 + $0x68] sm:$0xff]
        %v588 = vld [vmem:[#allocation10 + $0x70] sm:$0xff]
        %v589 = vld [vmem:[#allocation10 + $0x78] sm:$0xff]
        %v590 = vld [vmem:[%s6] sm:$0x3]
        %v592 = vperm.slane %v590, 0
        %v593 = vperm.slane %v590, 1
        %v612 = vunpack.c.l.b16 %v574
        %v613 = vunpack.c.h.b16 %v574
        %v614 = vunpack.c.l.b16 %v575
        %v615 = vunpack.c.h.b16 %v575
        %v616 = vunpack.c.l.b16 %v576
        %v617 = vunpack.c.h.b16 %v576
        %v618 = vunpack.c.l.b16 %v577
        %v619 = vunpack.c.h.b16 %v577
        %v620 = vunpack.c.l.b16 %v578
        %v621 = vunpack.c.h.b16 %v578
        %v622 = vunpack.c.l.b16 %v579
        %v623 = vunpack.c.h.b16 %v579
        %v624 = vunpack.c.l.b16 %v580
        %v625 = vunpack.c.h.b16 %v580
        %v626 = vunpack.c.l.b16 %v581
        %v627 = vunpack.c.h.b16 %v581
        %v628 = vunpack.c.l.b16 %v582
        %v629 = vunpack.c.h.b16 %v582
        %v630 = vunpack.c.l.b16 %v583
        %v631 = vunpack.c.h.b16 %v583
        %v632 = vunpack.c.l.b16 %v584
        %v633 = vunpack.c.h.b16 %v584
        %v634 = vunpack.c.l.b16 %v585
        %v635 = vunpack.c.h.b16 %v585
        %v636 = vunpack.c.l.b16 %v586
        %v637 = vunpack.c.h.b16 %v586
        %v638 = vunpack.c.l.b16 %v587
        %v639 = vunpack.c.h.b16 %v587
        %v640 = vunpack.c.l.b16 %v588
        %v641 = vunpack.c.h.b16 %v588
        %v642 = vunpack.c.l.b16 %v589
        %v643 = vunpack.c.h.b16 %v589
        %v644 = vpack.c.b16 %v614, %v612
        %v645 = vpack.c.b16 %v615, %v613
        %v646 = vpack.c.b16 %v618, %v616
        %v647 = vpack.c.b16 %v619, %v617
        %v648 = vpack.c.b16 %v622, %v620
        %v649 = vpack.c.b16 %v623, %v621
        %v650 = vpack.c.b16 %v626, %v624
        %v651 = vpack.c.b16 %v627, %v625
        %v652 = vpack.c.b16 %v630, %v628
        %v653 = vpack.c.b16 %v631, %v629
        %v654 = vpack.c.b16 %v634, %v632
        %v655 = vpack.c.b16 %v635, %v633
        %v656 = vpack.c.b16 %v638, %v636
        %v657 = vpack.c.b16 %v639, %v637
        %v658 = vpack.c.b16 %v642, %v640
        %v659 = vpack.c.b16 %v643, %v641
        %676 = vmatpush.bf16.msra.mxu0 %v658
        %677 = vmatpush.bf16.msra.mxu0 %v656
        %678 = vmatpush.bf16.msra.mxu0 %v654
        %679 = vmatpush.bf16.msra.mxu0 %v652
        %680 = vmatpush.bf16.msra.mxu0 %v650
        %681 = vmatpush.bf16.msra.mxu0 %v648
        %682 = vmatpush.bf16.msra.mxu0 %v646
        %683 = vmatpush.bf16.msra.mxu0 %v644
        %684 = vmatmul.bf16.gmra.mxu0 %v573
        %v685 = vpop.f32.mrf.mxu0
        %v686 = vadd.f32 %v592, %v685
        %v687 = vpop.f32.mrf.mxu0
        %v688 = vadd.f32 %v592, %v687
        %689 = vdwg.mxu0
        %690 = vmatpush.bf16.msra.mxu0 %v659
        %691 = vmatpush.bf16.msra.mxu0 %v657
        %692 = vmatpush.bf16.msra.mxu0 %v655
        %693 = vmatpush.bf16.msra.mxu0 %v653
        %694 = vmatpush.bf16.msra.mxu0 %v651
        %695 = vmatpush.bf16.msra.mxu0 %v649
        %696 = vmatpush.bf16.msra.mxu0 %v647
        %697 = vmatpush.bf16.msra.mxu0 %v645
        %698 = vmatmul.bf16.gmra.mxu0 %v573
        %v699 = vpop.f32.mrf.mxu0
        %v700 = vadd.f32 %v593, %v699
        %v701 = vpop.f32.mrf.mxu0
        %v702 = vadd.f32 %v593, %v701
        %703 = vdwg.mxu0
        %v704 = vmax.f32 %v686, 0.0
        %v705 = vmax.f32 %v700, 0.0
        %v706 = vmax.f32 %v688, 0.0
        %v707 = vmax.f32 %v702, 0.0
        %708 = vst [vmem:[%s389] sm:$0xff] %v704
        %709 = vst [vmem:[%s389 + $0x8] sm:$0xff] %v705
        %710 = vst [vmem:[%s389 + $0x10] sm:$0xff] %v706
        %711 = vst [vmem:[%s389 + $0x18] sm:$0xff] %v707
        %s712 = sand.u32 %s193, 1
        %s713 = scalar_lea.sflag [#allocation4], %s712
        %s714 = sand.u32 %s193, 1
        %s715 = smul.addr %s714, 32
        %s716 = scalar_lea.vmem [#allocation11], %s715
        // Predicated region
        $region69: #{tpu_custom_call.1} parent=47 // pred_check
          %p717 = pneg %p203
        $region70: #{tpu_custom_call.1} parent=47 // pred_check_branch
          %719 = sbr.rel (%p717) target = $region72
        $region71: #{tpu_custom_call.1} parent=47 // pred_region
          %s720 = smul.u32 2, %s28
          %722 = vsyncadd %s713, 0
          %s723 = smul.addr %s720, 2
          %s724 = smul.addr %s723, 8
          %s725 = scalar_lea.hbm %s7, %s724
          %s726 = sshll.u32 %s716, 4
          %s727 = int_to_ptr.vmem [resolvable:$true] %s726
          %s728 = sshll.u32 %s725, 4
          %s729 = int_to_ptr.hbm [resolvable:$true] %s728
          %734 = dma.vmem_to_hbm [thread:$0]  %s727, 512, %s729, %s713, 256, 256, 16
        $region72: #{tpu_custom_call.1} parent=47 // pred_fallthru
          _
      $region48: #{tpu_custom_call.1} parent=5 // pred_fallthru
        _
      %p735 = scmp.le.s32.totalorder 2, %s23
      // Predicated region
      $region73: #{tpu_custom_call.1} parent=5 // pred_check
        %p736 = pneg %p735
      $region74: #{tpu_custom_call.1} parent=5 // pred_check_branch
        %738 = sbr.rel (%p736) target = $region76
      $region75: #{tpu_custom_call.1} parent=5 // pred_region
        %s739 = ssub.s32 %s23, 2
        // Predicated region
        $region77: #{tpu_custom_call.1} parent=75 // pred_check
          %p740 = pneg %p209
        $region78: #{tpu_custom_call.1} parent=75 // pred_check_branch
          %742 = sbr.rel (%p740) target = $region80
        $region79: #{tpu_custom_call.1} parent=75 // pred_region
          %s743 = sand.u32 %s194, 1
          %s744 = scalar_lea.sflag [#allocation4], %s743
          %s745 = sand.u32 %s194, 1
          %s746 = smul.addr %s745, 32
          %s747 = scalar_lea.vmem [#allocation11], %s746
          %749 = dma.done %s744, 512
        $region80: #{tpu_custom_call.1} parent=75 // pred_fallthru
          _
      $region76: #{tpu_custom_call.1} parent=5 // pred_fallthru
        _
    $region6: #{tpu_custom_call.1} parent=1 // loop_footer
      %s27 = sadd.s32 1, %s23
    $region7: #{tpu_custom_call.1} parent=1 // loop_footer_branch
      %22 = sbr.rel target = $region3
    $region8: #{tpu_custom_call.1} parent=1 // loop_exit
      _
    %750 = vsyncpa [#allocation3], 1
    %s751 = scalar_lea.sflag [#allocation3], 1
    %752 = vsyncpa %s751, 1
    %753 = vsyncpa [#allocation6], 1
    %s754 = scalar_lea.sflag [#allocation6], 1
    %755 = vsyncpa %s754, 1
    %756 = vsyncpa [#allocation9], 1
    %757 = vsyncpa [#allocation4], 1
    %s758 = scalar_lea.sflag [#allocation4], 1
    %759 = vsyncpa %s758, 1

</llo_original>
